<compile_context>
chip_gen: v5e
topology: v5e:2x2
jax: 0.10.0
libtpu: 0.0.40
codegen_flags: <defaults>
</compile_context>

<pallas_src>
import functools

import jax
import jax.numpy as jnp
from jax.experimental import pallas as pl
from jax.experimental.pallas import tpu as pltpu

EPS = 1e-12
_MAX_BLOCK_BYTES = 1536 * 1024  # ~1.5 MiB per block (f32), VMEM-friendly


def _round_up(x, m):
    return ((x + m - 1) // m) * m


def _balanced_tile(n, align, hard_cap, bytes_per_unit):
    """Tile size along one axis: multiple of `align`, <= hard_cap, block stays
    under _MAX_BLOCK_BYTES, and padding is balanced across tiles."""
    vmem_cap = max(align, (_MAX_BLOCK_BYTES // max(bytes_per_unit, 1) // align) * align)
    cap = max(align, min(hard_cap, vmem_cap))
    if n <= cap:
        return _round_up(n, align)
    nt = -(-n // cap)                       # number of tiles at the cap
    return _round_up(-(-n // nt), align)    # balanced tile (pad <= align-1 per tile)


# ---------------------------------------------------------------------------
# Kernel A: normalize over the LAST axis (AxTrans=True).
#   x block: (tm, D) with D on the lane axis -> lane reduction.
# ---------------------------------------------------------------------------
def _rownorm_kernel(x_ref, g_ref, b_ref, o_ref, *, n_feat):
    x = x_ref[...].astype(jnp.float32)
    mu = jnp.mean(x, axis=-1, keepdims=True)
    d = x - mu
    # torch .std(): unbiased (n-1) variance; eps added to the std.
    var = jnp.sum(d * d, axis=-1, keepdims=True) * (1.0 / (n_feat - 1))
    inv = pl.reciprocal(jnp.sqrt(var) + EPS, approx=True)
    y = g_ref[...] * (d * inv) + b_ref[...]
    o_ref[...] = y.astype(o_ref.dtype)


def _layer_gnorm_last_axis(x2d, gamma, beta, *, max_tile_m=2048):
    M, D = x2d.shape
    tm = _balanced_tile(M, 8, max_tile_m, D * 4)
    Mp = _round_up(M, tm)
    xp = x2d if Mp == M else jnp.pad(x2d, ((0, Mp - M), (0, 0)))
    out = pl.pallas_call(
        functools.partial(_rownorm_kernel, n_feat=D),
        out_shape=jax.ShapeDtypeStruct((Mp, D), x2d.dtype),
        grid=(Mp // tm,),
        in_specs=[pl.BlockSpec((tm, D), lambda i: (i, 0)),
                  pl.BlockSpec((1, D), lambda i: (0, 0)),
                  pl.BlockSpec((1, D), lambda i: (0, 0))],
        out_specs=pl.BlockSpec((tm, D), lambda i: (i, 0)),
        compiler_params=pltpu.CompilerParams(dimension_semantics=("parallel",)),
    )(xp, gamma.reshape(1, D).astype(jnp.float32),
      beta.reshape(1, D).astype(jnp.float32))
    return out[:M] if Mp != M else out


# ---------------------------------------------------------------------------
# Kernel B: normalize over the CHANNEL axis (AxTrans=False) directly in the
#   native NCHW layout: x viewed as (B, C, H*W); channels sit on the sublane
#   axis (XLU reduce), spatial stays lane-dense -> no transpose passes.
# ---------------------------------------------------------------------------
def _chnorm_kernel(x_ref, g_ref, b_ref, o_ref, *, n_chan):
    x = x_ref[0].astype(jnp.float32)             # (C, ts)
    mu = jnp.mean(x, axis=0, keepdims=True)      # (1, ts)  sublane reduce
    d = x - mu
    var = jnp.sum(d * d, axis=0, keepdims=True) * (1.0 / (n_chan - 1))
    inv = pl.reciprocal(jnp.sqrt(var) + EPS, approx=True)
    y = g_ref[...] * (d * inv) + b_ref[...]      # (C,1) affine, lane-broadcast
    o_ref[0] = y.astype(o_ref.dtype)


def _layer_gnorm_channel_axis(x, gamma, beta, *, max_tile_s=4096):
    B, C, H, W = x.shape
    S = H * W
    ts = _balanced_tile(S, 128, max_tile_s, C * 4)
    Sp = _round_up(S, ts)
    x3 = x.reshape(B, C, S)                      # contiguous view, no transpose
    if Sp != S:
        x3 = jnp.pad(x3, ((0, 0), (0, 0), (0, Sp - S)))
    out = pl.pallas_call(
        functools.partial(_chnorm_kernel, n_chan=C),
        out_shape=jax.ShapeDtypeStruct((B, C, Sp), x.dtype),
        grid=(B, Sp // ts),
        in_specs=[pl.BlockSpec((1, C, ts), lambda b, j: (b, 0, j)),
                  pl.BlockSpec((C, 1), lambda b, j: (0, 0)),
                  pl.BlockSpec((C, 1), lambda b, j: (0, 0))],
        out_specs=pl.BlockSpec((1, C, ts), lambda b, j: (b, 0, j)),
        compiler_params=pltpu.CompilerParams(
            dimension_semantics=("parallel", "parallel")),
    )(x3, gamma.reshape(C, 1).astype(jnp.float32),
      beta.reshape(C, 1).astype(jnp.float32))
    if Sp != S:
        out = out[:, :, :S]
    return out.reshape(B, C, H, W)


# ---------------------------------------------------------------------------
# public forward
# ---------------------------------------------------------------------------
def layer_gnorm(x, gamma=None, beta=None, *, ax_trans=False, param=True):
    """LayerGNorm forward (matches the PyTorch module in eval/train alike)."""
    if ax_trans:
        D = x.shape[-1]
        if (not param) or gamma is None:
            gamma = jnp.ones((D,), jnp.float32)
            beta = jnp.zeros((D,), jnp.float32)
        lead = 1
        for s in x.shape[:-1]:
            lead *= s
        out = _layer_gnorm_last_axis(x.reshape(lead, D),
                                     jnp.ravel(gamma), jnp.ravel(beta))
        return out.reshape(x.shape)
    else:
        C = x.shape[1]
        if (not param) or gamma is None:
            gamma = jnp.ones((C,), jnp.float32)
            beta = jnp.zeros((C,), jnp.float32)
        return _layer_gnorm_channel_axis(x, jnp.ravel(gamma), jnp.ravel(beta))


# ---------------------------------------------------------------------------
# pure-JAX reference (mirrors the PyTorch forward exactly)
# ---------------------------------------------------------------------------
def layer_gnorm_ref(x, gamma, beta, *, ax_trans=False, param=True):
    axis = -1 if ax_trans else 1
    n = x.shape[axis]
    mu = jnp.mean(x, axis=axis, keepdims=True)
    var = jnp.sum((x - mu) ** 2, axis=axis, keepdims=True) / (n - 1)
    xn = (x - mu) / (jnp.sqrt(var) + EPS)
    if not param:
        return xn
    if ax_trans:
        g = gamma.reshape((1,) * (x.ndim - 1) + (n,))
        b = beta.reshape((1,) * (x.ndim - 1) + (n,))
    else:
        g = gamma.reshape((1, n) + (1,) * (x.ndim - 2))
        b = beta.reshape((1, n) + (1,) * (x.ndim - 2))
    return g * xn + b


# ---------------------------------------------------------------------------
if __name__ == "__main__":
    key = jax.random.PRNGKey(0)
    k1, k2, k3, k4, k5, k6 = jax.random.split(key, 6)

    # Case 1: LayerGNorm(dim=C, AxTrans=False, param=True) on an NCHW tensor.
    B, C, H, W = 2, 32, 16, 16
    x_nchw = jax.random.normal(k1, (B, C, H, W), jnp.float32)
    g1 = 1.0 + 0.1 * jax.random.normal(k2, (C,), jnp.float32)
    b1 = 0.05 * jax.random.normal(k3, (C,), jnp.float32)
    fwd_ch = jax.jit(lambda a, g, b: layer_gnorm(a, g, b, ax_trans=False, param=True))
    out1 = jax.block_until_ready(fwd_ch(x_nchw, g1, b1))
    ref1 = layer_gnorm_ref(x_nchw, g1, b1, ax_trans=False, param=True)

    # Case 2: LayerGNorm(dim=D, AxTrans=True, param=True) on (B, N, D) tokens.
    Bt, N, D = 2, 37, 64          # N*Bt deliberately not a multiple of 8 (padding path)
    x_tok = jax.random.normal(k4, (Bt, N, D), jnp.float32)
    g2 = 1.0 + 0.1 * jax.random.normal(k5, (D,), jnp.float32)
    b2 = 0.05 * jax.random.normal(k6, (D,), jnp.float32)
    fwd_tok = jax.jit(lambda a, g, b: layer_gnorm(a, g, b, ax_trans=True, param=True))
    out2 = jax.block_until_ready(fwd_tok(x_tok, g2, b2))
    ref2 = layer_gnorm_ref(x_tok, g2, b2, ax_trans=True, param=True)

    # Case 3: param=False path (no affine), NCHW.
    fwd_np = jax.jit(lambda a: layer_gnorm(a, ax_trans=False, param=False))
    out3 = jax.block_until_ready(fwd_np(x_nchw))
    ref3 = layer_gnorm_ref(x_nchw, None, None, ax_trans=False, param=False)

    for o, r in ((out1, ref1), (out2, ref2), (out3, ref3)):
        assert o.shape == r.shape, (o.shape, r.shape)
        assert bool(jnp.all(jnp.isfinite(o)))
        err = float(jnp.max(jnp.abs(o - r)))
        # loose bound: pl.reciprocal(approx=True) shifts values slightly
        assert err < 5e-2, f"max abs err {err}"

    print("KERNEL_OK")
</pallas_src>

<mosaic_0001>
module attributes {stable_mosaic.version = 11 : i64} {
  func.func @_chnorm_kernel(%arg0: i32, %arg1: i32, %arg2: memref<1x32x256xf32, #tpu.memory_space<vmem>>, %arg3: memref<32x1xf32, #tpu.memory_space<vmem>>, %arg4: memref<32x1xf32, #tpu.memory_space<vmem>>, %arg5: memref<1x32x256xf32, #tpu.memory_space<vmem>>) attributes {dimension_semantics = [#tpu.dimension_semantics<parallel>, #tpu.dimension_semantics<parallel>], iteration_bounds = array<i64: 2, 1>, scalar_prefetch = 0 : i64, scratch_operands = 0 : i64, tpu.core_type = #tpu.core_type<tc>, window_params = [{transform_indices = @transform_0, window_bounds = array<i64: 1, 32, 256>}, {pipeline_mode = #tpu.pipeline_mode<synchronous>, transform_indices = @transform_1, window_bounds = array<i64: 32, 1>}, {pipeline_mode = #tpu.pipeline_mode<synchronous>, transform_indices = @transform_2, window_bounds = array<i64: 32, 1>}, {transform_indices = @transform_3, window_bounds = array<i64: 1, 32, 256>}]} {
    %c0 = arith.constant 0 : index
    %c0_0 = arith.constant 0 : index
    %c0_1 = arith.constant 0 : index
    %0 = vector.load %arg2[%c0, %c0_0, %c0_1] : memref<1x32x256xf32, #tpu.memory_space<vmem>>, vector<1x32x256xf32>
    %1 = vector.shape_cast %0 : vector<1x32x256xf32> to vector<32x256xf32>
    %cst = arith.constant dense<0.000000e+00> : vector<256xf32>
    %2 = vector.multi_reduction <add>, %1, %cst [0] : vector<32x256xf32> to vector<256xf32>
    %3 = vector.shape_cast %2 : vector<256xf32> to vector<1x256xf32>
    %cst_2 = arith.constant 3.200000e+01 : f32
    %4 = vector.broadcast %cst_2 : f32 to vector<1x256xf32>
    %5 = arith.divf %3, %4 : vector<1x256xf32>
    %6 = vector.broadcast %5 : vector<1x256xf32> to vector<32x256xf32>
    %7 = arith.subf %1, %6 : vector<32x256xf32>
    %8 = arith.mulf %7, %7 : vector<32x256xf32>
    %cst_3 = arith.constant dense<0.000000e+00> : vector<256xf32>
    %9 = vector.multi_reduction <add>, %8, %cst_3 [0] : vector<32x256xf32> to vector<256xf32>
    %10 = vector.shape_cast %9 : vector<256xf32> to vector<1x256xf32>
    %cst_4 = arith.constant 0.0322580636 : f32
    %11 = vector.broadcast %cst_4 : f32 to vector<1x256xf32>
    %12 = arith.mulf %10, %11 : vector<1x256xf32>
    %13 = math.sqrt %12 : vector<1x256xf32>
    %cst_5 = arith.constant 9.99999996E-13 : f32
    %14 = vector.broadcast %cst_5 : f32 to vector<1x256xf32>
    %15 = arith.addf %13, %14 : vector<1x256xf32>
    %16 = tpu.reciprocal %15 {approx = true} : vector<1x256xf32> -> vector<1x256xf32>
    %c0_6 = arith.constant 0 : index
    %c0_7 = arith.constant 0 : index
    %17 = vector.load %arg3[%c0_6, %c0_7] : memref<32x1xf32, #tpu.memory_space<vmem>>, vector<32x1xf32>
    %18 = vector.broadcast %16 : vector<1x256xf32> to vector<32x256xf32>
    %19 = arith.mulf %7, %18 : vector<32x256xf32>
    %20 = vector.broadcast %17 : vector<32x1xf32> to vector<32x256xf32>
    %21 = arith.mulf %20, %19 : vector<32x256xf32>
    %c0_8 = arith.constant 0 : index
    %c0_9 = arith.constant 0 : index
    %22 = vector.load %arg4[%c0_8, %c0_9] : memref<32x1xf32, #tpu.memory_space<vmem>>, vector<32x1xf32>
    %23 = vector.broadcast %22 : vector<32x1xf32> to vector<32x256xf32>
    %24 = arith.addf %21, %23 : vector<32x256xf32>
    %c0_10 = arith.constant 0 : index
    %c0_11 = arith.constant 0 : index
    %c0_12 = arith.constant 0 : index
    %25 = vector.load %arg5[%c0_10, %c0_11, %c0_12] : memref<1x32x256xf32, #tpu.memory_space<vmem>>, vector<1x32x256xf32>
    %26 = vector.shape_cast %25 : vector<1x32x256xf32> to vector<32x256xf32>
    %27 = vector.shape_cast %24 : vector<32x256xf32> to vector<1x32x256xf32>
    tpu.vector_store %arg5[%c0_10, %c0_11, %c0_12], %27 {strides = array<i32>} : memref<1x32x256xf32, #tpu.memory_space<vmem>>, vector<1x32x256xf32>,
    return
  }
  func.func @transform_0(%arg0: i32, %arg1: i32) -> (i32, i32, i32) {
    %c0_i32 = arith.constant 0 : i32
    %c0_i32_0 = arith.constant 0 : i32
    return %arg0, %c0_i32, %arg1 : i32, i32, i32
  }
  func.func @transform_1(%arg0: i32, %arg1: i32) -> (i32, i32) {
    %c0_i32 = arith.constant 0 : i32
    %c0_i32_0 = arith.constant 0 : i32
    %c0_i32_1 = arith.constant 0 : i32
    return %c0_i32, %c0_i32_0 : i32, i32
  }
  func.func @transform_2(%arg0: i32, %arg1: i32) -> (i32, i32) {
    %c0_i32 = arith.constant 0 : i32
    %c0_i32_0 = arith.constant 0 : i32
    %c0_i32_1 = arith.constant 0 : i32
    return %c0_i32, %c0_i32_0 : i32, i32
  }
  func.func @transform_3(%arg0: i32, %arg1: i32) -> (i32, i32, i32) {
    %c0_i32 = arith.constant 0 : i32
    %c0_i32_0 = arith.constant 0 : i32
    return %arg0, %c0_i32, %arg1 : i32, i32, i32
  }
}

</mosaic_0001>

<llo_original>
// kernel: _lambda_.1
$region0: #{_lambda_.1}
  #allocation0 [shape = 'u32[]', space=smem, size = 0x4, offset = 0x4, fixed_abs, tag = 'smem constant byte address 0x4 - core index']
  #allocation1 [shape = 'u32[72,128]{1,0:T(1,128)}', space=vmem, size = 0x9000, scoped, tag = 'internal scratch']
  %s0 = inlined_call_operand.vmem [shape: f32[2,32,256], index: 0, kind: input, shape index: {}]
  %s1 = inlined_call_operand.vmem [shape: f32[32,1], index: 1, kind: input, shape index: {}]
  %s2 = inlined_call_operand.vmem [shape: f32[32,1], index: 2, kind: input, shape index: {}]
  %s3 = inlined_call_operand.vmem [shape: f32[2,32,256], index: 3, kind: output, shape index: {}]
  %s4 = sld [smem:[#allocation0]]
  $region45: #{_lambda_.1} parent=0
    _
  %s6 = ssub.s32 1, %s4
  %s7 = scalar_select 0, %s6, %s4
  loop: start=0, step=1, limit=4
  $region2: #{_lambda_.1} parent=0 // loop_pre_header
    _
  $region3: #{_lambda_.1} parent=0 // loop_header
    %s9 = sphi 0, %s13
    %p10 = scmp.ge.s32.totalorder %s9, 4
    %s16 = sphi 0, %s28
    %s17 = sphi 0, %s24
    %s18 = sphi 0, %s16
    %s19 = sphi 0, %s17
    %s20 = sphi 0, %s18
    %s21 = sphi 0, %s19
    %s33 = sphi 0, %s35
    %s36 = sphi 0, %s33
    %s37 = sphi 0, %s36
    %s53 = sphi 0, %s37
    %s57 = sphi 0, %s57
    %s59 = sphi 0, %s57
    %s60 = sphi 0, %s59
    %s74 = sphi 0, %s60
    %s78 = sphi 0, %s78
    %s80 = sphi 0, %s78
    %s81 = sphi 0, %s80
    %s95 = sphi 0, %s81
    %s103 = sphi 0, %s105
    %s106 = sphi 0, %s103
    %s107 = sphi 0, %s106
    %s123 = sphi 0, %s107
  $region4: #{_lambda_.1} parent=0 // loop_header_branch
    %12 = sbr.rel (%p10) target = $region8
  $region5: #{_lambda_.1} parent=0 // loop_body
    %s14 = ssub.s32 %s9, 1
    %s15 = ssub.s32 %s9, 2
    %s22 = sadd.s32 1, %s17
    %p23 = scmp.ge.s32.totalorder %s22, 1
    %s24 = scalar_select %p23, 0, %s22
    %s25 = sadd.s32 1, %s16
    %s26 = scalar_select %p23, %s25, %s16
    %p27 = scmp.ge.s32.totalorder %s26, 2
    %s28 = scalar_select %p27, 0, %s26
    %s29 = ssub.s32 %s16, %s28
    %s30 = ssub.s32 %s17, %s24
    %s31 = sor.u32 %s29, %s30
    %p32 = scmp.eq.s32.totalorder %s31, 0
    %s34 = sadd.s32 %s33, 1
    %s35 = scalar_select %p32, %s33, %s34
    %p38 = pneg %p32
    %p39 = scmp.eq.s32.totalorder %s9, 1
    %p40 = por %p38, %p39
    %p41 = scmp.ne.s32.totalorder %s33, %s36
    %p42 = scmp.eq.s32.totalorder %s9, 0
    %p43 = por %p41, %p42
    %p44 = scmp.ne.s32.totalorder %s33, %s36
    %p45 = scmp.eq.s32.totalorder %s14, 1
    %p46 = por %p44, %p45
    %p47 = scmp.ne.s32.totalorder %s36, %s37
    %p48 = scmp.eq.s32.totalorder %s14, 0
    %p49 = por %p47, %p48
    %p50 = scmp.ne.s32.totalorder %s36, %s37
    %p51 = scmp.eq.s32.totalorder %s15, 1
    %p52 = por %p50, %p51
    %p54 = scmp.ne.s32.totalorder %s37, %s53
    %p55 = scmp.eq.s32.totalorder %s15, 0
    %p56 = por %p54, %p55
    %s58 = sadd.s32 %s57, 1
    %p61 = scmp.eq.s32.totalorder %s9, 1
    %p62 = scmp.ne.s32.totalorder %s57, %s59
    %p63 = scmp.eq.s32.totalorder %s9, 0
    %p64 = por %p62, %p63
    %p65 = scmp.ne.s32.totalorder %s57, %s59
    %p66 = scmp.eq.s32.totalorder %s14, 1
    %p67 = por %p65, %p66
    %p68 = scmp.ne.s32.totalorder %s59, %s60
    %p69 = scmp.eq.s32.totalorder %s14, 0
    %p70 = por %p68, %p69
    %p71 = scmp.ne.s32.totalorder %s59, %s60
    %p72 = scmp.eq.s32.totalorder %s15, 1
    %p73 = por %p71, %p72
    %p75 = scmp.ne.s32.totalorder %s60, %s74
    %p76 = scmp.eq.s32.totalorder %s15, 0
    %p77 = por %p75, %p76
    %s79 = sadd.s32 %s78, 1
    %p82 = scmp.eq.s32.totalorder %s9, 1
    %p83 = scmp.ne.s32.totalorder %s78, %s80
    %p84 = scmp.eq.s32.totalorder %s9, 0
    %p85 = por %p83, %p84
    %p86 = scmp.ne.s32.totalorder %s78, %s80
    %p87 = scmp.eq.s32.totalorder %s14, 1
    %p88 = por %p86, %p87
    %p89 = scmp.ne.s32.totalorder %s80, %s81
    %p90 = scmp.eq.s32.totalorder %s14, 0
    %p91 = por %p89, %p90
    %p92 = scmp.ne.s32.totalorder %s80, %s81
    %p93 = scmp.eq.s32.totalorder %s15, 1
    %p94 = por %p92, %p93
    %p96 = scmp.ne.s32.totalorder %s81, %s95
    %p97 = scmp.eq.s32.totalorder %s15, 0
    %p98 = por %p96, %p97
    %s99 = ssub.s32 %s16, %s28
    %s100 = ssub.s32 %s17, %s24
    %s101 = sor.u32 %s99, %s100
    %p102 = scmp.eq.s32.totalorder %s101, 0
    %s104 = sadd.s32 %s103, 1
    %s105 = scalar_select %p102, %s103, %s104
    %p108 = pneg %p102
    %p109 = scmp.eq.s32.totalorder %s9, 1
    %p110 = por %p108, %p109
    %p111 = scmp.ne.s32.totalorder %s103, %s106
    %p112 = scmp.eq.s32.totalorder %s9, 0
    %p113 = por %p111, %p112
    %p114 = scmp.ne.s32.totalorder %s103, %s106
    %p115 = scmp.eq.s32.totalorder %s14, 1
    %p116 = por %p114, %p115
    %p117 = scmp.ne.s32.totalorder %s106, %s107
    %p118 = scmp.eq.s32.totalorder %s14, 0
    %p119 = por %p117, %p118
    %p120 = scmp.ne.s32.totalorder %s106, %s107
    %p121 = scmp.eq.s32.totalorder %s15, 1
    %p122 = por %p120, %p121
    %p124 = scmp.ne.s32.totalorder %s107, %s123
    %p125 = scmp.eq.s32.totalorder %s15, 0
    %p126 = por %p124, %p125
    %p127 = scmp.le.s32.totalorder 1, %s9
    %p128 = scmp.lt.s32.totalorder %s9, 3
    %p129 = pnand %p127, %p128
    %p130 = pneg %p129
    // Predicated region
    $region9: #{_lambda_.1} parent=5 // pred_check
      _
    $region10: #{_lambda_.1} parent=5 // pred_check_branch
      %132 = sbr.rel (%p129) target = $region12
    $region11: #{_lambda_.1} parent=5 // pred_region
      %s133 = ssub.s32 %s9, 1
      // Predicated region
      $region13: #{_lambda_.1} parent=11 // pred_check
        %p134 = pneg %p70
      $region14: #{_lambda_.1} parent=11 // pred_check_branch
        %136 = sbr.rel (%p134) target = $region16
      $region15: #{_lambda_.1} parent=11 // pred_region
        _
      $region16: #{_lambda_.1} parent=11 // pred_fallthru
        _
      // Predicated region
      $region17: #{_lambda_.1} parent=11 // pred_check
        %p137 = pneg %p91
      $region18: #{_lambda_.1} parent=11 // pred_check_branch
        %139 = sbr.rel (%p137) target = $region20
      $region19: #{_lambda_.1} parent=11 // pred_region
        _
      $region20: #{_lambda_.1} parent=11 // pred_fallthru
        _
    $region12: #{_lambda_.1} parent=5 // pred_fallthru
      _
    %p140 = scmp.lt.s32.totalorder %s9, 2
    // Predicated region
    $region21: #{_lambda_.1} parent=5 // pred_check
      %p141 = pneg %p140
    $region22: #{_lambda_.1} parent=5 // pred_check_branch
      %143 = sbr.rel (%p141) target = $region24
    $region23: #{_lambda_.1} parent=5 // pred_region
      // Predicated region
      $region25: #{_lambda_.1} parent=23 // pred_check
        %p144 = pneg %p43
      $region26: #{_lambda_.1} parent=23 // pred_check_branch
        %146 = sbr.rel (%p144) target = $region28
      $region27: #{_lambda_.1} parent=23 // pred_region
        %s147 = smul.u32 2, %s17
        %p148 = scmp.lt.s32.totalorder %s16, 1
        %s149 = scalar_select %p148, %s16, 1
        %p150 = scmp.lt.s32.totalorder %s147, 1
        %s151 = scalar_select %p150, %s147, 1
        %s152 = smul.addr %s149, 8
        %s153 = sadd.s32 %s151, %s152
        %s154 = smul.addr %s153, 8
        %s155 = scalar_lea.vmem %s0, %s154
        %s156 = smul.u32 2, %s17
      $region28: #{_lambda_.1} parent=23 // pred_fallthru
        _
    $region24: #{_lambda_.1} parent=5 // pred_fallthru
      _
    %p157 = scmp.le.s32.totalorder 1, %s9
    %p158 = scmp.lt.s32.totalorder %s9, 3
    %p159 = pnand %p157, %p158
    %p160 = pneg %p159
    // Predicated region
    $region29: #{_lambda_.1} parent=5 // pred_check
      _
    $region30: #{_lambda_.1} parent=5 // pred_check_branch
      %162 = sbr.rel (%p159) target = $region32
    $region31: #{_lambda_.1} parent=5 // pred_region
      %s163 = ssub.s32 %s9, 1
      %s164 = smul.u32 2, %s19
      %p165 = scmp.lt.s32.totalorder %s18, 1
      %s166 = scalar_select %p165, %s18, 1
      %p167 = scmp.lt.s32.totalorder %s164, 1
      %s168 = scalar_select %p167, %s164, 1
      %s169 = smul.addr %s166, 8
      %s170 = sadd.s32 %s168, %s169
      %s171 = smul.addr %s170, 8
      %s172 = scalar_lea.vmem %s0, %s171
      %p173 = pneg %p49
      %p174 = pneg %p46
      %p175 = pneg %p70
      %p176 = pneg %p67
      %p177 = pneg %p91
      %p178 = pneg %p88
      %p179 = pneg %p119
      %p180 = pneg %p116
      %s181 = smul.u32 2, %s19
      %p182 = scmp.lt.s32.totalorder %s18, 1
      %s183 = scalar_select %p182, %s18, 1
      %p184 = scmp.lt.s32.totalorder %s181, 1
      %s185 = scalar_select %p184, %s181, 1
      %s186 = smul.addr %s183, 8
      %s187 = sadd.s32 %s185, %s186
      %s188 = smul.addr %s187, 8
      %s189 = scalar_lea.vmem %s3, %s188
      %s190 = smul.u32 2, %s19
      %p191 = scmp.lt.s32.totalorder %s18, 1
      %s192 = scalar_select %p191, %s18, 1
      %p193 = scmp.lt.s32.totalorder %s190, 1
      %s194 = scalar_select %p193, %s190, 1
      %s195 = smul.addr %s192, 8
      %s196 = sadd.s32 %s194, %s195
      %s197 = smul.addr %s196, 8
      %s198 = scalar_lea.vmem %s0, %s197
      %s199 = smul.u32 2, %s19
      %s200 = smul.u32 2, %s19
      %p201 = scmp.lt.s32.totalorder %s18, 1
      %s202 = scalar_select %p201, %s18, 1
      %p203 = scmp.lt.s32.totalorder %s200, 1
      %s204 = scalar_select %p203, %s200, 1
      %s205 = smul.addr %s202, 8
      %s206 = sadd.s32 %s204, %s205
      %s207 = smul.addr %s206, 8
      %s208 = scalar_lea.vmem %s3, %s207
      %s209 = smul.u32 2, %s19
      %v210 = vld [vmem:[%s198] sm:$0xff]
      %v211 = vld [vmem:[%s198 + $0x8] sm:$0xff]
      %v212 = vld [vmem:[%s198 + $0x10] sm:$0xff]
      %v213 = vld [vmem:[%s198 + $0x18] sm:$0xff]
      %v214 = vld [vmem:[%s198 + $0x20] sm:$0xff]
      %v215 = vld [vmem:[%s198 + $0x28] sm:$0xff]
      %v216 = vld [vmem:[%s198 + $0x30] sm:$0xff]
      %v217 = vld [vmem:[%s198 + $0x38] sm:$0xff]
      %v218 = vadd.f32 %v210, %v212
      %v219 = vadd.f32 %v218, %v214
      %v220 = vadd.f32 %v219, %v216
      %v221 = vrot.slane %v220, 4
      %v222 = vadd.f32 %v220, %v221
      %v223 = vrot.slane %v222, 2
      %v224 = vadd.f32 %v222, %v223
      %v225 = vrot.slane %v224, 1
      %v226 = vadd.f32 %v224, %v225
      %v227 = vadd.f32 %v211, %v213
      %v228 = vadd.f32 %v227, %v215
      %v229 = vadd.f32 %v228, %v217
      %v230 = vrot.slane %v229, 4
      %v231 = vadd.f32 %v229, %v230
      %v232 = vrot.slane %v231, 2
      %v233 = vadd.f32 %v231, %v232
      %v234 = vrot.slane %v233, 1
      %v235 = vadd.f32 %v233, %v234
      %v236 = vrcp.pop 32.0
      %v237 = vmul.f32 32.0, %v236
      %v238 = vsub.f32 1.0, %v237
      %v239 = vmul.f32 %v236, %v238
      %v240 = vadd.f32 %v236, %v239
      %vm241 = vweird.f32 %v236
      %v242 = vsel %vm241, %v236, %v240
      %v243 = vmul.f32 %v226, %v242
      %v244 = vmul.f32 %v235, %v242
      %v245 = vsub.f32 %v210, %v243
      %v246 = vsub.f32 %v211, %v244
      %v247 = vsub.f32 %v212, %v243
      %v248 = vsub.f32 %v213, %v244
      %v249 = vsub.f32 %v214, %v243
      %v250 = vsub.f32 %v215, %v244
      %v251 = vsub.f32 %v216, %v243
      %v252 = vsub.f32 %v217, %v244
      %v253 = vmul.f32 %v245, %v245
      %v254 = vmul.f32 %v246, %v246
      %v255 = vmul.f32 %v247, %v247
      %v256 = vmul.f32 %v248, %v248
      %v257 = vmul.f32 %v249, %v249
      %v258 = vmul.f32 %v250, %v250
      %v259 = vmul.f32 %v251, %v251
      %v260 = vmul.f32 %v252, %v252
      %v261 = vadd.f32 %v253, %v255
      %v262 = vadd.f32 %v261, %v257
      %v263 = vadd.f32 %v262, %v259
      %v264 = vrot.slane %v263, 4
      %v265 = vadd.f32 %v263, %v264
      %v266 = vrot.slane %v265, 2
      %v267 = vadd.f32 %v265, %v266
      %v268 = vrot.slane %v267, 1
      %v269 = vadd.f32 %v267, %v268
      %v270 = vadd.f32 %v254, %v256
      %v271 = vadd.f32 %v270, %v258
      %v272 = vadd.f32 %v271, %v260
      %v273 = vrot.slane %v272, 4
      %v274 = vadd.f32 %v272, %v273
      %v275 = vrot.slane %v274, 2
      %v276 = vadd.f32 %v274, %v275
      %v277 = vrot.slane %v276, 1
      %v278 = vadd.f32 %v276, %v277
      %v279 = vmul.f32 %v269, 0.032258064
      %v280 = vmul.f32 %v278, 0.032258064
      %v281 = vrsqrt.pop %v279
      %v282 = vmul.f32 %v281, %v279
      %v283 = vmul.f32 %v282, %v281
      %v284 = vmul.f32 0.5, %v283
      %v285 = vsub.f32 1.5, %v284
      %v286 = vmul.f32 %v281, %v285
      %v287 = vmul.f32 %v279, %v286
      %vm288 = vcmp.eq.f32.partialorder %v279, inf
      %v289 = vsel %vm288, %v279, %v287
      %vm290 = vcmp.eq.f32.partialorder %v279, 0.0
      %v291 = vand.u32 %v279, 2147483648
      %v292 = vsel %vm290, %v291, %v289
      %v293 = vrsqrt.pop %v280
      %v294 = vmul.f32 %v293, %v280
      %v295 = vmul.f32 %v294, %v293
      %v296 = vmul.f32 0.5, %v295
      %v297 = vsub.f32 1.5, %v296
      %v298 = vmul.f32 %v293, %v297
      %v299 = vmul.f32 %v280, %v298
      %vm300 = vcmp.eq.f32.partialorder %v280, inf
      %v301 = vsel %vm300, %v280, %v299
      %vm302 = vcmp.eq.f32.partialorder %v280, 0.0
      %v303 = vand.u32 %v280, 2147483648
      %v304 = vsel %vm302, %v303, %v301
      %v305 = vadd.f32 %v292, 1e-12
      %v306 = vadd.f32 %v304, 1e-12
      %v307 = vrcp.pop %v305
      %v308 = vrcp.pop %v306
      %v309 = vld [vmem:[%s1] sm:$0xff]
      %v310 = vld [vmem:[%s1 + $0x8] sm:$0xff]
      %v311 = vld [vmem:[%s1 + $0x10] sm:$0xff]
      %v312 = vld [vmem:[%s1 + $0x18] sm:$0xff]
      %v313 = vmul.f32 %v245, %v307
      %v314 = vmul.f32 %v246, %v308
      %v315 = vmul.f32 %v247, %v307
      %v316 = vmul.f32 %v248, %v308
      %v317 = vmul.f32 %v249, %v307
      %v318 = vmul.f32 %v250, %v308
      %v319 = vmul.f32 %v251, %v307
      %v320 = vmul.f32 %v252, %v308
      %322 = vset.pattern.permute.xlu0 0
      %323 = vperm.xlu0 %322, %v309
      %v324 = vpop.permute.xlu0 %323
      %327 = vset.pattern.permute.xlu0 0
      %328 = vperm.xlu0 %327, %v310
      %v329 = vpop.permute.xlu0 %328
      %332 = vset.pattern.permute.xlu0 0
      %333 = vperm.xlu0 %332, %v311
      %v334 = vpop.permute.xlu0 %333
      %337 = vset.pattern.permute.xlu0 0
      %338 = vperm.xlu0 %337, %v312
      %v339 = vpop.permute.xlu0 %338
      %v341 = vmul.f32 %v324, %v313
      %v342 = vmul.f32 %v324, %v314
      %v343 = vmul.f32 %v329, %v315
      %v344 = vmul.f32 %v329, %v316
      %v345 = vmul.f32 %v334, %v317
      %v346 = vmul.f32 %v334, %v318
      %v347 = vmul.f32 %v339, %v319
      %v348 = vmul.f32 %v339, %v320
      %v349 = vld [vmem:[%s2] sm:$0xff]
      %v350 = vld [vmem:[%s2 + $0x8] sm:$0xff]
      %v351 = vld [vmem:[%s2 + $0x10] sm:$0xff]
      %v352 = vld [vmem:[%s2 + $0x18] sm:$0xff]
      %354 = vset.pattern.permute.xlu0 0
      %355 = vperm.xlu0 %354, %v349
      %v356 = vpop.permute.xlu0 %355
      %359 = vset.pattern.permute.xlu0 0
      %360 = vperm.xlu0 %359, %v350
      %v361 = vpop.permute.xlu0 %360
      %364 = vset.pattern.permute.xlu0 0
      %365 = vperm.xlu0 %364, %v351
      %v366 = vpop.permute.xlu0 %365
      %369 = vset.pattern.permute.xlu0 0
      %370 = vperm.xlu0 %369, %v352
      %v371 = vpop.permute.xlu0 %370
      %v373 = vadd.f32 %v341, %v356
      %v374 = vadd.f32 %v342, %v356
      %v375 = vadd.f32 %v343, %v361
      %v376 = vadd.f32 %v344, %v361
      %v377 = vadd.f32 %v345, %v366
      %v378 = vadd.f32 %v346, %v366
      %v379 = vadd.f32 %v347, %v371
      %v380 = vadd.f32 %v348, %v371
      %381 = vst [vmem:[%s208] sm:$0xff] %v373
      %382 = vst [vmem:[%s208 + $0x8] sm:$0xff] %v374
      %383 = vst [vmem:[%s208 + $0x10] sm:$0xff] %v375
      %384 = vst [vmem:[%s208 + $0x18] sm:$0xff] %v376
      %385 = vst [vmem:[%s208 + $0x20] sm:$0xff] %v377
      %386 = vst [vmem:[%s208 + $0x28] sm:$0xff] %v378
      %387 = vst [vmem:[%s208 + $0x30] sm:$0xff] %v379
      %388 = vst [vmem:[%s208 + $0x38] sm:$0xff] %v380
      %s389 = smul.u32 2, %s19
      %p390 = scmp.lt.s32.totalorder %s18, 1
      %s391 = scalar_select %p390, %s18, 1
      %p392 = scmp.lt.s32.totalorder %s389, 1
      %s393 = scalar_select %p392, %s389, 1
      %s394 = smul.addr %s391, 8
      %s395 = sadd.s32 %s393, %s394
      %s396 = smul.addr %s395, 8
      %s397 = scalar_lea.vmem %s3, %s396
      // Predicated region
      $region33: #{_lambda_.1} parent=31 // pred_check
        %p398 = pneg %p116
      $region34: #{_lambda_.1} parent=31 // pred_check_branch
        %400 = sbr.rel (%p398) target = $region36
      $region35: #{_lambda_.1} parent=31 // pred_region
        %s401 = smul.u32 2, %s19
      $region36: #{_lambda_.1} parent=31 // pred_fallthru
        _
    $region32: #{_lambda_.1} parent=5 // pred_fallthru
      _
    %p402 = scmp.le.s32.totalorder 2, %s9
    // Predicated region
    $region37: #{_lambda_.1} parent=5 // pred_check
      %p403 = pneg %p402
    $region38: #{_lambda_.1} parent=5 // pred_check_branch
      %405 = sbr.rel (%p403) target = $region40
    $region39: #{_lambda_.1} parent=5 // pred_region
      %s406 = ssub.s32 %s9, 2
      // Predicated region
      $region41: #{_lambda_.1} parent=39 // pred_check
        %p407 = pneg %p122
      $region42: #{_lambda_.1} parent=39 // pred_check_branch
        %409 = sbr.rel (%p407) target = $region44
      $region43: #{_lambda_.1} parent=39 // pred_region
        %s410 = smul.u32 2, %s21
        %p411 = scmp.lt.s32.totalorder %s20, 1
        %s412 = scalar_select %p411, %s20, 1
        %p413 = scmp.lt.s32.totalorder %s410, 1
        %s414 = scalar_select %p413, %s410, 1
        %s415 = smul.addr %s412, 8
        %s416 = sadd.s32 %s414, %s415
        %s417 = smul.addr %s416, 8
        %s418 = scalar_lea.vmem %s3, %s417
      $region44: #{_lambda_.1} parent=39 // pred_fallthru
        _
    $region40: #{_lambda_.1} parent=5 // pred_fallthru
      _
  $region6: #{_lambda_.1} parent=0 // loop_footer
    %s13 = sadd.s32 1, %s9
  $region7: #{_lambda_.1} parent=0 // loop_footer_branch
    %8 = sbr.rel target = $region3
  $region8: #{_lambda_.1} parent=0 // loop_exit
    _

</llo_original>
